<compile_context>
chip_gen: v7x
topology: tpu7x:2x2x1
jax: 0.10.0
libtpu: 0.0.40
codegen_flags: <defaults>
</compile_context>

<pallas_src>
import jax
import jax.numpy as jnp
from jax.experimental import pallas as pl
from jax.experimental.pallas import tpu as pltpu


def _linear_decoder_kernel(x_ref, w_ref, b_ref, o_ref):
    # x_ref: (TM, F), w_ref: (F, OUT), b_ref: (1, OUT), o_ref: (TM, OUT)
    acc = jnp.dot(x_ref[...], w_ref[...], preferred_element_type=jnp.float32)
    acc = acc + b_ref[...]                      # broadcast (1, OUT)
    o_ref[...] = jax.nn.sigmoid(acc).astype(o_ref.dtype)


def _round_up(n, m):
    return ((n + m - 1) // m) * m


def _choose_tm(B, tm_max=1024):
    """Batch tile: multiple of 8, <= tm_max, >= 2 grid steps when B > 8."""
    if B <= 8:
        return 8
    n_steps = max(2, pl.cdiv(B, tm_max))        # >=2 steps: megacore on v7x
    tm = _round_up(pl.cdiv(B, n_steps), 8)
    return min(tm, tm_max)


def linear_decoder_forward(spikes, weight_t, bias):
    """spikes:   (B, n_cells+1, n_bins_past) f32
       weight_t: (F, OUT) f32  (transposed PyTorch Linear weight,
                                F = (n_cells+1)*n_bins_past)
       bias:     (OUT,) f32
       returns:  (B, OUT) f32 == sigmoid(flatten(spikes) @ weight_t + bias)
    """
    B = spikes.shape[0]
    F = spikes.shape[1] * spikes.shape[2]
    OUT = weight_t.shape[1]

    TM = _choose_tm(B)
    B_pad = _round_up(B, TM)
    grid = (B_pad // TM,)

    x = spikes.reshape(B, F)                    # torch.nn.Flatten equivalent
    if B_pad > B:
        # Batch-only zero pad (bounded by < TM rows); padded rows yield
        # sigmoid(bias) — finite — and are sliced off below.
        x = jnp.pad(x, ((0, B_pad - B), (0, 0)))
    b2 = bias.reshape(1, OUT)

    cost = pl.CostEstimate(
        flops=2 * B_pad * F * OUT,
        transcendentals=B_pad * OUT,
        bytes_accessed=4 * (B_pad * F + F * OUT + OUT + B_pad * OUT),
    )

    out_p = pl.pallas_call(
        _linear_decoder_kernel,
        out_shape=jax.ShapeDtypeStruct((B_pad, OUT), jnp.float32),
        grid=grid,
        in_specs=[
            pl.BlockSpec((TM, F), lambda i: (i, 0)),     # x: streamed per tile
            pl.BlockSpec((F, OUT), lambda i: (0, 0)),    # W: VMEM-resident
            pl.BlockSpec((1, OUT), lambda i: (0, 0)),    # b: VMEM-resident
        ],
        out_specs=pl.BlockSpec((TM, OUT), lambda i: (i, 0)),
        compiler_params=pltpu.CompilerParams(
            dimension_semantics=("parallel",)),          # megacore on v7x
        cost_estimate=cost,
    )(x, weight_t, b2)

    if B_pad > B:
        out_p = out_p[:B]
    return out_p


if __name__ == "__main__":
    # Small shapes consistent with the module:
    #   n_cells=4, n_bins_past=5 -> in_features = (4+1)*5 = 25
    #   n_x=8, n_y=4             -> out_features = 32
    n_cells, n_bins_past = 4, 5
    n_x, n_y = 8, 4
    batch = 8
    in_features = (n_cells + 1) * n_bins_past
    out_features = n_x * n_y

    key = jax.random.PRNGKey(0)
    k_x, k_w, k_b = jax.random.split(key, 3)

    # Deterministic synthetic parameters (shapes match nn.Linear(in, out)).
    # PyTorch weight is (out, in); store transposed (in, out) for the kernel.
    bound = 1.0 / (in_features ** 0.5)
    weight = jax.random.uniform(k_w, (out_features, in_features),
                                jnp.float32, -bound, bound)
    bias = jax.random.uniform(k_b, (out_features,), jnp.float32, -bound, bound)
    weight_t = weight.T

    spikes = jax.random.normal(k_x, (batch, n_cells + 1, n_bins_past),
                               jnp.float32)

    out = linear_decoder_forward(spikes, weight_t, bias)
    out = jax.block_until_ready(out)

    # Reference check in plain JAX.
    ref = jax.nn.sigmoid(spikes.reshape(batch, -1) @ weight_t + bias)
    assert out.shape == (batch, out_features)
    assert jnp.allclose(out, ref, atol=1e-5, rtol=1e-5)

    print("KERNEL_OK")
</pallas_src>

<mosaic_0001>
module attributes {stable_mosaic.version = 11 : i64} {
  func.func @_linear_decoder_kernel(%arg0: i32, %arg1: memref<8x25xf32, #tpu.memory_space<vmem>>, %arg2: memref<25x32xf32, #tpu.memory_space<vmem>>, %arg3: memref<1x32xf32, #tpu.memory_space<vmem>>, %arg4: memref<8x32xf32, #tpu.memory_space<vmem>>) attributes {dimension_semantics = [#tpu.dimension_semantics<parallel>], iteration_bounds = array<i64: 1>, scalar_prefetch = 0 : i64, scratch_operands = 0 : i64, tpu.core_type = #tpu.core_type<tc>, window_params = [{transform_indices = @transform_0, window_bounds = array<i64: 8, 25>}, {pipeline_mode = #tpu.pipeline_mode<synchronous>, transform_indices = @transform_1, window_bounds = array<i64: 25, 32>}, {pipeline_mode = #tpu.pipeline_mode<synchronous>, transform_indices = @transform_2, window_bounds = array<i64: 1, 32>}, {transform_indices = @transform_3, window_bounds = array<i64: 8, 32>}]} {
    %c0 = arith.constant 0 : index
    %c0_0 = arith.constant 0 : index
    %0 = vector.load %arg1[%c0, %c0_0] : memref<8x25xf32, #tpu.memory_space<vmem>>, vector<8x25xf32>
    %c0_1 = arith.constant 0 : index
    %c0_2 = arith.constant 0 : index
    %1 = vector.load %arg2[%c0_1, %c0_2] : memref<25x32xf32, #tpu.memory_space<vmem>>, vector<25x32xf32>
    %cst = arith.constant dense<0.000000e+00> : vector<8x32xf32>
    %2 = tpu.matmul %0, %1, %cst {dimension_numbers = #tpu.dot_dimension_numbers<[1], [0], [0], [1], [0, 0, 1, 1], [], []>} : vector<8x25xf32>, vector<25x32xf32>, vector<8x32xf32> -> vector<8x32xf32>
    %c0_3 = arith.constant 0 : index
    %c0_4 = arith.constant 0 : index
    %3 = vector.load %arg3[%c0_3, %c0_4] : memref<1x32xf32, #tpu.memory_space<vmem>>, vector<1x32xf32>
    %4 = vector.broadcast %3 : vector<1x32xf32> to vector<8x32xf32>
    %5 = arith.addf %2, %4 : vector<8x32xf32>
    %6 = arith.negf %5 : vector<8x32xf32>
    %7 = math.exp %6 : vector<8x32xf32>
    %cst_5 = arith.constant 1.000000e+00 : f32
    %8 = vector.broadcast %cst_5 : f32 to vector<8x32xf32>
    %9 = arith.addf %8, %7 : vector<8x32xf32>
    %10 = arith.divf %8, %9 : vector<8x32xf32>
    %c0_6 = arith.constant 0 : index
    %c0_7 = arith.constant 0 : index
    %11 = vector.load %arg4[%c0_6, %c0_7] : memref<8x32xf32, #tpu.memory_space<vmem>>, vector<8x32xf32>
    tpu.vector_store %arg4[%c0_6, %c0_7], %10 {strides = array<i32>} : memref<8x32xf32, #tpu.memory_space<vmem>>, vector<8x32xf32>,
    return
  }
  func.func @transform_0(%arg0: i32) -> (i32, i32) {
    %c0_i32 = arith.constant 0 : i32
    %c0_i32_0 = arith.constant 0 : i32
    return %arg0, %c0_i32 : i32, i32
  }
  func.func @transform_1(%arg0: i32) -> (i32, i32) {
    %c0_i32 = arith.constant 0 : i32
    %c0_i32_0 = arith.constant 0 : i32
    %c0_i32_1 = arith.constant 0 : i32
    return %c0_i32, %c0_i32_0 : i32, i32
  }
  func.func @transform_2(%arg0: i32) -> (i32, i32) {
    %c0_i32 = arith.constant 0 : i32
    %c0_i32_0 = arith.constant 0 : i32
    %c0_i32_1 = arith.constant 0 : i32
    return %c0_i32, %c0_i32_0 : i32, i32
  }
  func.func @transform_3(%arg0: i32) -> (i32, i32) {
    %c0_i32 = arith.constant 0 : i32
    %c0_i32_0 = arith.constant 0 : i32
    return %arg0, %c0_i32 : i32, i32
  }
}

</mosaic_0001>

<llo_original>
// kernel: tpu_custom_call.1
$region0: #{tpu_custom_call.1}
  #allocation0 [shape = 'u32[]', space=smem, size = 0x4, offset = 0x4, fixed_abs, tag = 'smem constant byte address 0x4 - core index']
  #allocation1 [shape = 'u32[144,128]{1,0:T(1,128)}', space=vmem, size = 0x12000, scoped, tag = 'internal scratch']
  %s0 = inlined_call_operand.hbm [shape: f32[8,25], index: 0, kind: input, shape index: {}]
  %s1 = inlined_call_operand.hbm [shape: f32[25,32], index: 1, kind: input, shape index: {}]
  %s2 = inlined_call_operand.vmem [shape: f32[1,32], index: 2, kind: input, shape index: {}]
  %s3 = inlined_call_operand.hbm [shape: f32[8,32], index: 3, kind: output, shape index: {}]
  %s4 = sld [smem:[#allocation0]]
  $region30: #{tpu_custom_call.1} parent=0
    _
  %s6 = ssub.s32 1, %s4
  %s7 = scalar_select 0, %s6, %s4
  $region1: #{tpu_custom_call.1} parent=0
    #allocation2 [shape = 'u8[4096]{0}', space=vmem, size = 0x1000, scoped, tag = 'input window, operand 0, single buffered']
    #allocation3 [shape = 's32[1]{0}', space=sflag, size = 0x4, scoped, tag = 'scoped memory for tpu_custom_call.1']
    #allocation4 [shape = 's32[1]{0}', space=sflag, size = 0x4, scoped, tag = 'scoped memory for tpu_custom_call.1']
    #allocation5 [shape = 'u8[16384]{0}', space=vmem, size = 0x4000, scoped, tag = 'input window, operand 1, single buffered']
    #allocation6 [shape = 's32[1]{0}', space=sflag, size = 0x4, scoped, tag = 'scoped memory for tpu_custom_call.1']
    #allocation7 [shape = 'u8[4096]{0}', space=vmem, size = 0x1000, scoped, tag = 'output window, operand 0, single buffered']
    %8 = vsyncpa [#allocation3], 0
    %9 = vsyncpa [#allocation6], 0
    %10 = vsyncpa [#allocation4], 0
    // Predicated region
    $region2: #{tpu_custom_call.1} parent=1 // pred_check
      _
    $region3: #{tpu_custom_call.1} parent=1 // pred_check_branch
      %12 = sbr.rel (0) target = $region5
    $region4: #{tpu_custom_call.1} parent=1 // pred_region
      %s14 = ssub.s32 128, 128
      %15 = vsyncadd [#allocation3], %s14
      %s17 = sshll.u32 [#allocation2], 4
      %s18 = int_to_ptr.vmem [resolvable:$true] %s17
      %20 = dma.hbm_to_vmem [thread:$0]  %s0, 128, %s18, [#allocation3]
    $region5: #{tpu_custom_call.1} parent=1 // pred_fallthru
      _
    // Predicated region
    $region6: #{tpu_custom_call.1} parent=1 // pred_check
      _
    $region7: #{tpu_custom_call.1} parent=1 // pred_check_branch
      %22 = sbr.rel (0) target = $region9
    $region8: #{tpu_custom_call.1} parent=1 // pred_region
      %s24 = ssub.s32 512, 512
      %25 = vsyncadd [#allocation6], %s24
      %s26 = sshll.u32 [#allocation5], 4
      %s27 = int_to_ptr.vmem [resolvable:$true] %s26
      %32 = dma.hbm_to_vmem [thread:$0]  %s1, 512, %s27, [#allocation6], 128, 128, 8
    $region9: #{tpu_custom_call.1} parent=1 // pred_fallthru
      _
    // Predicated region
    $region10: #{tpu_custom_call.1} parent=1 // pred_check
      _
    $region11: #{tpu_custom_call.1} parent=1 // pred_check_branch
      %34 = sbr.rel (0) target = $region13
    $region12: #{tpu_custom_call.1} parent=1 // pred_region
      _
    $region13: #{tpu_custom_call.1} parent=1 // pred_fallthru
      _
    // Predicated region
    $region14: #{tpu_custom_call.1} parent=1 // pred_check
      _
    $region15: #{tpu_custom_call.1} parent=1 // pred_check_branch
      %36 = sbr.rel (0) target = $region17
    $region16: #{tpu_custom_call.1} parent=1 // pred_region
      %37 = dma.done [#allocation3], 128
    $region17: #{tpu_custom_call.1} parent=1 // pred_fallthru
      _
    // Predicated region
    $region18: #{tpu_custom_call.1} parent=1 // pred_check
      _
    $region19: #{tpu_custom_call.1} parent=1 // pred_check_branch
      %39 = sbr.rel (0) target = $region21
    $region20: #{tpu_custom_call.1} parent=1 // pred_region
      %40 = dma.done [#allocation6], 512
    $region21: #{tpu_custom_call.1} parent=1 // pred_fallthru
      _
    %v41 = vld [vmem:[#allocation2] sm:$0xff]
    %v42 = vld [vmem:[#allocation5] sm:$0xff]
    %v43 = vld [vmem:[#allocation5 + $0x8] sm:$0xff]
    %v44 = vld [vmem:[#allocation5 + $0x10] sm:$0xff]
    %v45 = vld [vmem:[#allocation5 + $0x18] sm:$0x1]
    %v46 = vld [vmem:[%s2] sm:$0x1]
    %v48 = vlaneseq
    %v49 = vshrl.u32 %v48, 7
    %v50 = vsub.s32 0, %v49
    %v51 = vrot.slane %v46, %v50
    %vm53 = vcmask 203776
    %v55 = vsel %vm53, %v41, 0
    %vm57 = vcmask 1040384
    %v59 = vsel %vm57, %v45, 0
    %61 = vmatprep.subr.mxu0 0.0
    %62 = vmatpush1.msra.mxu0 %v42
    %63 = vmatprep.subr.mxu0 0.0
    %64 = vmatpush1.msra.mxu0 %v43
    %65 = vmatprep.subr.mxu0 0.0
    %66 = vmatpush1.msra.mxu0 %v44
    %67 = vmatprep.subr.mxu0 0.0
    %68 = vmatpush1.msra.mxu0 %v59
    %69 = vmatprep.subr.mxu0 0.0
    %70 = vmatpush1.msra.mxu0 0.0
    %71 = vmatprep.subr.mxu0 0.0
    %72 = vmatpush1.msra.mxu0 0.0
    %73 = vmatprep.subr.mxu0 0.0
    %74 = vmatpush1.msra.mxu0 0.0
    %75 = vmatprep.subr.mxu0 0.0
    %76 = vmatpush1.msra.mxu0 0.0
    %77 = vmatprep.subr.mxu0 0.0
    %78 = vmatpush1.msra.mxu0 0.0
    %79 = vmatprep.subr.mxu0 0.0
    %80 = vmatpush1.msra.mxu0 0.0
    %81 = vmatprep.subr.mxu0 0.0
    %82 = vmatpush1.msra.mxu0 0.0
    %83 = vmatprep.subr.mxu0 0.0
    %84 = vmatpush1.msra.mxu0 0.0
    %85 = vmatprep.subr.mxu0 0.0
    %86 = vmatpush1.msra.mxu0 0.0
    %87 = vmatprep.subr.mxu0 0.0
    %88 = vmatpush1.msra.mxu0 0.0
    %89 = vmatprep.subr.mxu0 0.0
    %90 = vmatpush1.msra.mxu0 0.0
    %91 = vmatprep.subr.mxu0 0.0
    %92 = vmatpush1.msra.mxu0 0.0
    %93 = vmatprep.subr.mxu0 0.0
    %94 = vmatpush1.msra.mxu0 0.0
    %95 = vmatprep.subr.mxu0 0.0
    %96 = vmatpush1.msra.mxu0 0.0
    %97 = vmatprep.subr.mxu0 0.0
    %98 = vmatpush1.msra.mxu0 0.0
    %99 = vmatprep.subr.mxu0 0.0
    %100 = vmatpush1.msra.mxu0 0.0
    %101 = vmatprep.subr.mxu0 0.0
    %102 = vmatpush1.msra.mxu0 0.0
    %103 = vmatprep.subr.mxu0 0.0
    %104 = vmatpush1.msra.mxu0 0.0
    %105 = vmatprep.subr.mxu0 0.0
    %106 = vmatpush1.msra.mxu0 0.0
    %107 = vmatprep.subr.mxu0 0.0
    %108 = vmatpush1.msra.mxu0 0.0
    %109 = vmatprep.subr.mxu0 0.0
    %110 = vmatpush1.msra.mxu0 0.0
    %111 = vmatprep.subr.mxu0 0.0
    %112 = vmatpush1.msra.mxu0 0.0
    %113 = vmatprep.subr.mxu0 0.0
    %114 = vmatpush1.msra.mxu0 0.0
    %115 = vmatprep.subr.mxu0 0.0
    %116 = vmatpush1.msra.mxu0 0.0
    %117 = vmatprep.subr.mxu0 0.0
    %118 = vmatpush1.msra.mxu0 0.0
    %119 = vmatprep.subr.mxu0 0.0
    %120 = vmatpush1.msra.mxu0 0.0
    %121 = vmatprep.subr.mxu0 0.0
    %122 = vmatpush1.msra.mxu0 0.0
    %123 = vmatprep.subr.mxu0 0.0
    %124 = vmatpush1.msra.mxu0 0.0
    %125 = vmatprep.mubr.f32.mxu0 0.0
    %126 = vmatmul.mubr.f32.gmra.mrb[0].mxu0 %v55
    %v127 = vpop.f32.mrb[0].mxu0
    %v128 = vadd.f32 %v51, %v127
    %v129 = vpop.f32.mrb[0].mxu0
    %130 = vdwg.mxu0
    %v131 = vxor.u32 %v128, 2147483648
    %v132 = vmul.f32 %v131, 1.442695
    %v133 = vpow.pop %v132
    %v134 = vadd.f32 %v133, 1.0
    %v135 = vrcp.pop %v134
    %v136 = vmul.f32 1.0, %v135
    %vm137 = vcmask 261120
    %138 = vst.msk [vmem:[#allocation7] sm:$0xff] %vm137, %v136
    // Predicated region
    $region22: #{tpu_custom_call.1} parent=1 // pred_check
      _
    $region23: #{tpu_custom_call.1} parent=1 // pred_check_branch
      %140 = sbr.rel (0) target = $region25
    $region24: #{tpu_custom_call.1} parent=1 // pred_region
      %s142 = ssub.s32 128, 128
      %143 = vsyncadd [#allocation4], %s142
      %s145 = sshll.u32 [#allocation7], 4
      %s146 = int_to_ptr.vmem [resolvable:$true] %s145
      %148 = dma.vmem_to_hbm [thread:$0]  %s146, 128, %s3, [#allocation4]
    $region25: #{tpu_custom_call.1} parent=1 // pred_fallthru
      _
    // Predicated region
    $region26: #{tpu_custom_call.1} parent=1 // pred_check
      _
    $region27: #{tpu_custom_call.1} parent=1 // pred_check_branch
      %150 = sbr.rel (0) target = $region29
    $region28: #{tpu_custom_call.1} parent=1 // pred_region
      %151 = dma.done [#allocation4], 128
    $region29: #{tpu_custom_call.1} parent=1 // pred_fallthru
      _
    %152 = vsyncpa [#allocation3], 1
    %153 = vsyncpa [#allocation6], 1
    %154 = vsyncpa [#allocation4], 1

</llo_original>
